<compile_context>
chip_gen: v7x
topology: tpu7x:2x2x1
jax: 0.10.0
libtpu: 0.0.40
codegen_flags: <defaults>
</compile_context>

<pallas_src>
import functools

import jax
import jax.numpy as jnp
from jax.experimental import pallas as pl
from jax.experimental.pallas import tpu as pltpu

LN_EPS = 1e-5     # nn.LayerNorm default eps
PIX_EPS = 1e-6    # norm_pix_loss eps
_SUBLANE = 32     # row-tile multiple: covers f32 (8), bf16 (16), int8 (32) packing


def _round_up(x, m):
    return ((x + m - 1) // m) * m


def _choose_tm(M, D, P, itemsize, tm_max=4096, min_grid=8,
               stream_budget_bytes=32 << 20):
    """Rows per grid step.

    Sized so the two double-buffered streaming operands (tokens TM*D and
    target TM*P) stay under `stream_budget_bytes` (32 MiB -> fits v7x's
    64 MiB VMEM with room for weights and compiler scratch; v5e/v6e have
    128 MiB so the same choice is safe there).  Capped at tm_max, rounded to
    a multiple of 32, and kept small enough that the grid retains at least
    `min_grid` steps when there is enough work.
    """
    bytes_per_row = (D + P) * itemsize
    tm = stream_budget_bytes // (2 * bytes_per_row)      # 2x: double buffering
    tm = min(tm, tm_max)
    if M >= min_grid * _SUBLANE:
        tm = min(tm, _round_up(pl.cdiv(M, min_grid), _SUBLANE))
    tm = min(tm, _round_up(M, _SUBLANE))
    tm = max((tm // _SUBLANE) * _SUBLANE, _SUBLANE)
    return int(tm)


def _vit_head_decoder_kernel(x_ref, gamma_ref, beta_ref, w_ref, b_ref,
                             target_ref, mask_ref, out_ref, *, norm_pix_loss):
    # x_ref: (TM, D) token tile (includes cls rows; those are masked out).
    x = x_ref[...].astype(jnp.float32)
    d = x.shape[-1]
    inv_d = 1.0 / d

    # ----- LayerNorm, fused single-pass statistics -----
    s1 = jnp.sum(x, axis=-1, keepdims=True)
    s2 = jnp.sum(x * x, axis=-1, keepdims=True)
    mean = s1 * inv_d
    var = jnp.maximum(s2 * inv_d - mean * mean, 0.0)   # clamp single-pass var
    xn = (x - mean) * jax.lax.rsqrt(var + LN_EPS)
    xn = xn * gamma_ref[...] + beta_ref[...]           # broadcast (1, D), f32

    # ----- decoder_pred: Linear(D -> P) on the MXU, f32 accumulation -----
    # Operand dtype follows the weight dtype: bf16 feed -> bf16 MXU operands
    # (full-rate path), f32 feed -> all-f32 (exact-parity path).
    y = jnp.dot(xn.astype(w_ref.dtype), w_ref[...],
                preferred_element_type=jnp.float32) + b_ref[...]

    # ----- target (+ optional fused norm_pix normalization) -----
    t = target_ref[...].astype(jnp.float32)
    if norm_pix_loss:
        p = t.shape[-1]
        ts1 = jnp.sum(t, axis=-1, keepdims=True)
        ts2 = jnp.sum(t * t, axis=-1, keepdims=True)
        tmean = ts1 / p
        # torch's .var() default is unbiased (ddof=1)
        tvar = jnp.maximum((ts2 - p * tmean * tmean) / (p - 1), 0.0)
        t = (t - tmean) * jax.lax.rsqrt(tvar + PIX_EPS)

    # ----- masked squared-error reduction -----
    diff = y - t
    sq = diff * diff                                   # (TM, P)
    row_sq = jnp.sum(sq, axis=-1, keepdims=True)       # (TM, 1)  XLU reduce
    m = mask_ref[0]                                    # (1, TM)  lane-dense
    partial = jnp.dot(m, row_sq, preferred_element_type=jnp.float32)  # (1, 1)

    # Lane-dense per-step partial numerator; final sum / divides happen in JAX.
    out_ref[0] = jnp.broadcast_to(partial, (1, 128))


def patchify(imgs, patch_size):
    """imgs: (N, C, H, W) -> (N, L, patch_size**2 * C)  (pure-JAX glue)."""
    n, c, hh, ww = imgs.shape
    p = patch_size
    assert hh == ww and hh % p == 0
    h = w = hh // p
    x = imgs.reshape(n, c, h, p, w, p)
    x = jnp.einsum('nchpwq->nhwpqc', x)
    return x.reshape(n, h * w, p * p * c)


def vit_head_decoder_forward(x_inp, mask, ids_restore, imgs, params,
                             patch_size=4, norm_pix_loss=False,
                             tm_max=4096, input_dtype=jnp.bfloat16):
    """Returns the scalar masked-MSE loss matching ViTHeadDecoder.forward.

    input_dtype: dtype of the streamed tokens/target (bf16 default halves
    HBM->VMEM bytes of this memory-bound kernel; pass jnp.float32 / None for
    exact-parity numerics).
    """
    del ids_restore  # unused by the reference forward
    N, Lp1, D = x_inp.shape
    C = imgs.shape[1]
    P = patch_size * patch_size * C

    # Targets, with a dummy zero row per batch aligned with the cls token, so
    # the token stream can be a free reshape of contiguous x_inp (no
    # x_inp[:, 1:, :] materialized HBM copy).
    target = patchify(imgs, patch_size)                       # (N, L, P)
    target = jnp.pad(target, ((0, 0), (1, 0), (0, 0)))        # (N, L+1, P)

    tokens = x_inp.reshape(N * Lp1, D)                        # free reshape
    target = target.reshape(N * Lp1, P)
    mask_rows = jnp.pad(mask.astype(jnp.float32),
                        ((0, 0), (1, 0))).reshape(N * Lp1)    # cls rows -> 0

    if input_dtype is None:
        in_dtype = jax.dtypes.canonicalize_dtype(x_inp.dtype)
    else:
        in_dtype = jax.dtypes.canonicalize_dtype(input_dtype)
    tokens = tokens.astype(in_dtype)
    target = target.astype(in_dtype)
    w_dtype = jnp.bfloat16 if in_dtype.name == 'bfloat16' else jnp.float32

    # ----- row tiling -----
    M = N * Lp1
    itemsize = in_dtype.itemsize
    TM = _choose_tm(M, D, P, itemsize, tm_max=tm_max)
    M_pad = _round_up(M, TM)
    T = M_pad // TM
    if M_pad != M:
        pad = M_pad - M
        tokens = jnp.pad(tokens, ((0, pad), (0, 0)))
        target = jnp.pad(target, ((0, pad), (0, 0)))
        mask_rows = jnp.pad(mask_rows, (0, pad))              # padded rows masked
    mask_tiles = mask_rows.reshape(T, 1, TM)                  # lane-dense per tile

    gamma = params['ln_w'].reshape(1, D).astype(jnp.float32)
    beta = params['ln_b'].reshape(1, D).astype(jnp.float32)
    w = params['pred_w'].astype(w_dtype)                      # (D, P)
    b = params['pred_b'].reshape(1, P).astype(jnp.float32)

    # VMEM estimate: double-buffered streams + constant operands + small bits.
    # (Constant-index-map operands are DMA'd only once; their second buffer is
    #  a small waste -- TODO(synk): single-buffer them via pipeline_mode once
    #  pl.Buffered(1) is verified on the target jax version.)
    vmem_est = (2 * TM * (D + P) * itemsize
                + 2 * D * P * jnp.dtype(w_dtype).itemsize
                + 2 * (2 * D + P) * 4
                + 2 * TM * 4
                + 2 * 128 * 4)
    vmem_limit = int(min(max(vmem_est + (16 << 20), 32 << 20), 60 << 20))

    kernel = functools.partial(_vit_head_decoder_kernel,
                               norm_pix_loss=norm_pix_loss)

    partials = pl.pallas_call(
        kernel,
        out_shape=jax.ShapeDtypeStruct((T, 1, 128), jnp.float32),
        grid_spec=pltpu.PrefetchScalarGridSpec(
            num_scalar_prefetch=0,
            grid=(T,),
            in_specs=[
                pl.BlockSpec((TM, D), lambda i: (i, 0)),        # tokens
                pl.BlockSpec((1, D), lambda i: (0, 0)),         # ln weight
                pl.BlockSpec((1, D), lambda i: (0, 0)),         # ln bias
                pl.BlockSpec((D, P), lambda i: (0, 0)),         # pred weight
                pl.BlockSpec((1, P), lambda i: (0, 0)),         # pred bias
                pl.BlockSpec((TM, P), lambda i: (i, 0)),        # target
                pl.BlockSpec((1, 1, TM), lambda i: (i, 0, 0)),  # lane-dense mask
            ],
            out_specs=pl.BlockSpec((1, 1, 128), lambda i: (i, 0, 0)),
        ),
        compiler_params=pltpu.CompilerParams(
            dimension_semantics=("parallel",),
            vmem_limit_bytes=vmem_limit),
    )(tokens, gamma, beta, w, b, target, mask_tiles)

    num = jnp.sum(partials[:, 0, 0])               # masked sum of squared errors
    den = jnp.sum(mask.astype(jnp.float32))        # masked-patch count
    return num / (den * P)


def reference_forward(x_inp, mask, imgs, params, patch_size=4,
                      norm_pix_loss=False):
    """Pure-JAX reference replicating the PyTorch forward."""
    D = x_inp.shape[-1]
    mean = jnp.mean(x_inp, axis=-1, keepdims=True)
    var = jnp.mean((x_inp - mean) ** 2, axis=-1, keepdims=True)
    xn = (x_inp - mean) / jnp.sqrt(var + LN_EPS)
    xn = xn * params['ln_w'].reshape(1, 1, D) + params['ln_b'].reshape(1, 1, D)
    y = jnp.einsum('nld,dp->nlp', xn, params['pred_w']) + params['pred_b']
    pred = y[:, 1:, :]
    target = patchify(imgs, patch_size)
    if norm_pix_loss:
        tmean = jnp.mean(target, axis=-1, keepdims=True)
        tvar = jnp.var(target, axis=-1, keepdims=True, ddof=1)   # torch unbiased
        target = (target - tmean) / jnp.sqrt(tvar + PIX_EPS)
    loss = jnp.mean((pred - target) ** 2, axis=-1)
    return jnp.sum(loss * mask) / jnp.sum(mask)


if __name__ == "__main__":
    # Small config: patch_size=4, in_chans=3, decoder_embed_dim=32, 16x16 image.
    patch_size = 4
    in_chans = 3
    D = 32                       # decoder_embed_dim
    N = 2                        # batch
    H = W = 16
    h = H // patch_size
    L = h * h                    # 16 patches
    P = patch_size * patch_size * in_chans   # 48

    key = jax.random.PRNGKey(0)
    k_x, k_img, k_mask, k_w = jax.random.split(key, 4)

    x_inp = jax.random.normal(k_x, (N, L + 1, D), dtype=jnp.float32)
    imgs = jax.random.normal(k_img, (N, in_chans, H, W), dtype=jnp.float32)
    mask = (jax.random.uniform(k_mask, (N, L)) > 0.25).astype(jnp.float32)
    mask = mask.at[:, 0].set(1.0)   # ensure mask.sum() > 0
    ids_restore = jnp.tile(jnp.arange(L, dtype=jnp.int32)[None, :], (N, 1))

    # Deterministic parameter init matching the module's init scheme:
    #   LayerNorm: weight=1, bias=0.  Linear: xavier_uniform weight, bias=0.
    limit = (6.0 / (D + P)) ** 0.5
    pred_w = jax.random.uniform(k_w, (D, P), minval=-limit, maxval=limit,
                                dtype=jnp.float32)
    params = {
        'ln_w': jnp.ones((D,), jnp.float32),
        'ln_b': jnp.zeros((D,), jnp.float32),
        'pred_w': pred_w,                 # (in, out) layout for x @ W
        'pred_b': jnp.zeros((P,), jnp.float32),
    }

    # ---- exact-parity path (f32 streams / f32 MXU) ----
    loss_f32 = vit_head_decoder_forward(x_inp, mask, ids_restore, imgs, params,
                                        patch_size=patch_size,
                                        input_dtype=jnp.float32)
    loss_f32 = jax.block_until_ready(loss_f32)
    ref = reference_forward(x_inp, mask, imgs, params, patch_size=patch_size)
    assert jnp.allclose(loss_f32, ref, rtol=1e-4, atol=1e-5), (loss_f32, ref)

    # ---- norm_pix_loss=True, fused in-kernel target normalization (f32) ----
    loss_npl = vit_head_decoder_forward(x_inp, mask, ids_restore, imgs, params,
                                        patch_size=patch_size,
                                        norm_pix_loss=True,
                                        input_dtype=jnp.float32)
    loss_npl = jax.block_until_ready(loss_npl)
    ref_npl = reference_forward(x_inp, mask, imgs, params,
                                patch_size=patch_size, norm_pix_loss=True)
    assert jnp.allclose(loss_npl, ref_npl, rtol=1e-4, atol=1e-5), (loss_npl, ref_npl)

    # ---- default fast path: bf16 streams + bf16 MXU operands, f32 accum ----
    loss_bf16 = vit_head_decoder_forward(x_inp, mask, ids_restore, imgs, params,
                                         patch_size=patch_size)
    loss_bf16 = jax.block_until_ready(loss_bf16)
    assert jnp.isfinite(loss_bf16)
    assert jnp.allclose(loss_bf16, ref, rtol=5e-2, atol=5e-2), (loss_bf16, ref)

    print("KERNEL_OK")
</pallas_src>

<mosaic_0001>
module attributes {stable_mosaic.version = 11 : i64} {
  func.func @_vit_head_decoder_kernel(%arg0: i32, %arg1: memref<64x32xf32, #tpu.memory_space<vmem>>, %arg2: memref<1x32xf32, #tpu.memory_space<vmem>>, %arg3: memref<1x32xf32, #tpu.memory_space<vmem>>, %arg4: memref<32x48xf32, #tpu.memory_space<vmem>>, %arg5: memref<1x48xf32, #tpu.memory_space<vmem>>, %arg6: memref<64x48xf32, #tpu.memory_space<vmem>>, %arg7: memref<1x1x64xf32, #tpu.memory_space<vmem>>, %arg8: memref<1x1x128xf32, #tpu.memory_space<vmem>>) attributes {dimension_semantics = [#tpu.dimension_semantics<parallel>], iteration_bounds = array<i64: 1>, scalar_prefetch = 0 : i64, scratch_operands = 0 : i64, tpu.core_type = #tpu.core_type<tc>, window_params = [{transform_indices = @transform_0, window_bounds = array<i64: 64, 32>}, {pipeline_mode = #tpu.pipeline_mode<synchronous>, transform_indices = @transform_1, window_bounds = array<i64: 1, 32>}, {pipeline_mode = #tpu.pipeline_mode<synchronous>, transform_indices = @transform_2, window_bounds = array<i64: 1, 32>}, {pipeline_mode = #tpu.pipeline_mode<synchronous>, transform_indices = @transform_3, window_bounds = array<i64: 32, 48>}, {pipeline_mode = #tpu.pipeline_mode<synchronous>, transform_indices = @transform_4, window_bounds = array<i64: 1, 48>}, {transform_indices = @transform_5, window_bounds = array<i64: 64, 48>}, {transform_indices = @transform_6, window_bounds = array<i64: 1, 1, 64>}, {transform_indices = @transform_7, window_bounds = array<i64: 1, 1, 128>}]} {
    %c0 = arith.constant 0 : index
    %c0_0 = arith.constant 0 : index
    %0 = vector.load %arg1[%c0, %c0_0] : memref<64x32xf32, #tpu.memory_space<vmem>>, vector<64x32xf32>
    %cst = arith.constant dense<0.000000e+00> : vector<64xf32>
    %1 = vector.multi_reduction <add>, %0, %cst [1] : vector<64x32xf32> to vector<64xf32>
    %2 = vector.shape_cast %1 : vector<64xf32> to vector<64x1xf32>
    %3 = arith.mulf %0, %0 : vector<64x32xf32>
    %cst_1 = arith.constant dense<0.000000e+00> : vector<64xf32>
    %4 = vector.multi_reduction <add>, %3, %cst_1 [1] : vector<64x32xf32> to vector<64xf32>
    %5 = vector.shape_cast %4 : vector<64xf32> to vector<64x1xf32>
    %cst_2 = arith.constant 3.125000e-02 : f32
    %6 = vector.broadcast %cst_2 : f32 to vector<64x1xf32>
    %7 = arith.mulf %2, %6 : vector<64x1xf32>
    %cst_3 = arith.constant 3.125000e-02 : f32
    %8 = vector.broadcast %cst_3 : f32 to vector<64x1xf32>
    %9 = arith.mulf %5, %8 : vector<64x1xf32>
    %10 = arith.mulf %7, %7 : vector<64x1xf32>
    %11 = arith.subf %9, %10 : vector<64x1xf32>
    %cst_4 = arith.constant 0.000000e+00 : f32
    %12 = vector.broadcast %cst_4 : f32 to vector<64x1xf32>
    %13 = arith.maximumf %11, %12 : vector<64x1xf32>
    %14 = vector.broadcast %7 : vector<64x1xf32> to vector<64x32xf32>
    %15 = arith.subf %0, %14 : vector<64x32xf32>
    %cst_5 = arith.constant 9.99999974E-6 : f32
    %16 = vector.broadcast %cst_5 : f32 to vector<64x1xf32>
    %17 = arith.addf %13, %16 : vector<64x1xf32>
    %18 = math.rsqrt %17 : vector<64x1xf32>
    %19 = vector.broadcast %18 : vector<64x1xf32> to vector<64x32xf32>
    %20 = arith.mulf %15, %19 : vector<64x32xf32>
    %c0_6 = arith.constant 0 : index
    %c0_7 = arith.constant 0 : index
    %21 = vector.load %arg2[%c0_6, %c0_7] : memref<1x32xf32, #tpu.memory_space<vmem>>, vector<1x32xf32>
    %22 = vector.broadcast %21 : vector<1x32xf32> to vector<64x32xf32>
    %23 = arith.mulf %20, %22 : vector<64x32xf32>
    %c0_8 = arith.constant 0 : index
    %c0_9 = arith.constant 0 : index
    %24 = vector.load %arg3[%c0_8, %c0_9] : memref<1x32xf32, #tpu.memory_space<vmem>>, vector<1x32xf32>
    %25 = vector.broadcast %24 : vector<1x32xf32> to vector<64x32xf32>
    %26 = arith.addf %23, %25 : vector<64x32xf32>
    %c0_10 = arith.constant 0 : index
    %c0_11 = arith.constant 0 : index
    %27 = vector.load %arg4[%c0_10, %c0_11] : memref<32x48xf32, #tpu.memory_space<vmem>>, vector<32x48xf32>
    %cst_12 = arith.constant dense<0.000000e+00> : vector<64x48xf32>
    %28 = tpu.matmul %26, %27, %cst_12 {dimension_numbers = #tpu.dot_dimension_numbers<[1], [0], [0], [1], [0, 0, 1, 1], [], []>} : vector<64x32xf32>, vector<32x48xf32>, vector<64x48xf32> -> vector<64x48xf32>
    %c0_13 = arith.constant 0 : index
    %c0_14 = arith.constant 0 : index
    %29 = vector.load %arg5[%c0_13, %c0_14] : memref<1x48xf32, #tpu.memory_space<vmem>>, vector<1x48xf32>
    %30 = vector.broadcast %29 : vector<1x48xf32> to vector<64x48xf32>
    %31 = arith.addf %28, %30 : vector<64x48xf32>
    %c0_15 = arith.constant 0 : index
    %c0_16 = arith.constant 0 : index
    %32 = vector.load %arg6[%c0_15, %c0_16] : memref<64x48xf32, #tpu.memory_space<vmem>>, vector<64x48xf32>
    %33 = arith.subf %31, %32 : vector<64x48xf32>
    %34 = arith.mulf %33, %33 : vector<64x48xf32>
    %cst_17 = arith.constant dense<0.000000e+00> : vector<64xf32>
    %35 = vector.multi_reduction <add>, %34, %cst_17 [1] : vector<64x48xf32> to vector<64xf32>
    %36 = vector.shape_cast %35 : vector<64xf32> to vector<64x1xf32>
    %c0_18 = arith.constant 0 : index
    %c0_19 = arith.constant 0 : index
    %c0_20 = arith.constant 0 : index
    %37 = vector.load %arg7[%c0_18, %c0_19, %c0_20] : memref<1x1x64xf32, #tpu.memory_space<vmem>>, vector<1x1x64xf32>
    %38 = vector.shape_cast %37 : vector<1x1x64xf32> to vector<1x64xf32>
    %cst_21 = arith.constant dense<0.000000e+00> : vector<1x1xf32>
    %39 = tpu.matmul %38, %36, %cst_21 {dimension_numbers = #tpu.dot_dimension_numbers<[1], [0], [0], [1], [0, 0, 1, 1], [], []>} : vector<1x64xf32>, vector<64x1xf32>, vector<1x1xf32> -> vector<1x1xf32>
    %40 = vector.shape_cast %39 : vector<1x1xf32> to vector<1x1xf32>
    %41 = vector.broadcast %40 : vector<1x1xf32> to vector<1x128xf32>
    %c0_22 = arith.constant 0 : index
    %c0_23 = arith.constant 0 : index
    %c0_24 = arith.constant 0 : index
    %42 = vector.load %arg8[%c0_22, %c0_23, %c0_24] : memref<1x1x128xf32, #tpu.memory_space<vmem>>, vector<1x1x128xf32>
    %43 = vector.shape_cast %42 : vector<1x1x128xf32> to vector<1x128xf32>
    %44 = vector.shape_cast %41 : vector<1x128xf32> to vector<1x1x128xf32>
    tpu.vector_store %arg8[%c0_22, %c0_23, %c0_24], %44 {strides = array<i32>} : memref<1x1x128xf32, #tpu.memory_space<vmem>>, vector<1x1x128xf32>,
    return
  }
  func.func @transform_0(%arg0: i32) -> (i32, i32) {
    %c0_i32 = arith.constant 0 : i32
    %c0_i32_0 = arith.constant 0 : i32
    return %arg0, %c0_i32 : i32, i32
  }
  func.func @transform_1(%arg0: i32) -> (i32, i32) {
    %c0_i32 = arith.constant 0 : i32
    %c0_i32_0 = arith.constant 0 : i32
    %c0_i32_1 = arith.constant 0 : i32
    return %c0_i32, %c0_i32_0 : i32, i32
  }
  func.func @transform_2(%arg0: i32) -> (i32, i32) {
    %c0_i32 = arith.constant 0 : i32
    %c0_i32_0 = arith.constant 0 : i32
    %c0_i32_1 = arith.constant 0 : i32
    return %c0_i32, %c0_i32_0 : i32, i32
  }
  func.func @transform_3(%arg0: i32) -> (i32, i32) {
    %c0_i32 = arith.constant 0 : i32
    %c0_i32_0 = arith.constant 0 : i32
    %c0_i32_1 = arith.constant 0 : i32
    return %c0_i32, %c0_i32_0 : i32, i32
  }
  func.func @transform_4(%arg0: i32) -> (i32, i32) {
    %c0_i32 = arith.constant 0 : i32
    %c0_i32_0 = arith.constant 0 : i32
    %c0_i32_1 = arith.constant 0 : i32
    return %c0_i32, %c0_i32_0 : i32, i32
  }
  func.func @transform_5(%arg0: i32) -> (i32, i32) {
    %c0_i32 = arith.constant 0 : i32
    %c0_i32_0 = arith.constant 0 : i32
    return %arg0, %c0_i32 : i32, i32
  }
  func.func @transform_6(%arg0: i32) -> (i32, i32, i32) {
    %c0_i32 = arith.constant 0 : i32
    %c0_i32_0 = arith.constant 0 : i32
    %c0_i32_1 = arith.constant 0 : i32
    return %arg0, %c0_i32, %c0_i32_0 : i32, i32, i32
  }
  func.func @transform_7(%arg0: i32) -> (i32, i32, i32) {
    %c0_i32 = arith.constant 0 : i32
    %c0_i32_0 = arith.constant 0 : i32
    %c0_i32_1 = arith.constant 0 : i32
    return %arg0, %c0_i32, %c0_i32_0 : i32, i32, i32
  }
}

</mosaic_0001>

<llo_original>
// kernel: tpu_custom_call.1
$region0: #{tpu_custom_call.1}
  #allocation0 [shape = 'u32[]', space=smem, size = 0x4, offset = 0x4, fixed_abs, tag = 'smem constant byte address 0x4 - core index']
  #allocation1 [shape = 'u32[144,128]{1,0:T(1,128)}', space=vmem, size = 0x12000, scoped, tag = 'internal scratch']
  %s0 = inlined_call_operand.vmem [shape: f32[64,32], index: 0, kind: input, shape index: {}]
  %s1 = inlined_call_operand.vmem [shape: f32[1,32], index: 1, kind: input, shape index: {}]
  %s2 = inlined_call_operand.vmem [shape: f32[1,32], index: 2, kind: input, shape index: {}]
  %s3 = inlined_call_operand.vmem [shape: f32[32,48], index: 3, kind: input, shape index: {}]
  %s4 = inlined_call_operand.vmem [shape: f32[1,48], index: 4, kind: input, shape index: {}]
  %s5 = inlined_call_operand.vmem [shape: f32[64,48], index: 5, kind: input, shape index: {}]
  %s6 = inlined_call_operand.vmem [shape: f32[1,1,64], index: 6, kind: input, shape index: {}]
  %s7 = inlined_call_operand.hbm [shape: f32[1,1,128], index: 7, kind: output, shape index: {}]
  %s8 = sld [smem:[#allocation0]]
  $region38: #{tpu_custom_call.1} parent=0
    _
  %s10 = ssub.s32 1, %s8
  %s11 = scalar_select 0, %s10, %s8
  $region1: #{tpu_custom_call.1} parent=0
    #allocation2 [shape = 'u8[512]{0}', space=vmem, size = 0x400, scoped, tag = 'output window, operand 0, single buffered']
    #allocation3 [shape = 's32[1]{0}', space=sflag, size = 0x4, scoped, tag = 'scoped memory for tpu_custom_call.1']
    %12 = vsyncpa [#allocation3], 0
    // Predicated region
    $region2: #{tpu_custom_call.1} parent=1 // pred_check
      _
    $region3: #{tpu_custom_call.1} parent=1 // pred_check_branch
      %14 = sbr.rel (0) target = $region5
    $region4: #{tpu_custom_call.1} parent=1 // pred_region
      _
    $region5: #{tpu_custom_call.1} parent=1 // pred_fallthru
      _
    // Predicated region
    $region6: #{tpu_custom_call.1} parent=1 // pred_check
      _
    $region7: #{tpu_custom_call.1} parent=1 // pred_check_branch
      %16 = sbr.rel (0) target = $region9
    $region8: #{tpu_custom_call.1} parent=1 // pred_region
      _
    $region9: #{tpu_custom_call.1} parent=1 // pred_fallthru
      _
    // Predicated region
    $region10: #{tpu_custom_call.1} parent=1 // pred_check
      _
    $region11: #{tpu_custom_call.1} parent=1 // pred_check_branch
      %18 = sbr.rel (0) target = $region13
    $region12: #{tpu_custom_call.1} parent=1 // pred_region
      _
    $region13: #{tpu_custom_call.1} parent=1 // pred_fallthru
      _
    // Predicated region
    $region14: #{tpu_custom_call.1} parent=1 // pred_check
      _
    $region15: #{tpu_custom_call.1} parent=1 // pred_check_branch
      %20 = sbr.rel (0) target = $region17
    $region16: #{tpu_custom_call.1} parent=1 // pred_region
      _
    $region17: #{tpu_custom_call.1} parent=1 // pred_fallthru
      _
    // Predicated region
    $region18: #{tpu_custom_call.1} parent=1 // pred_check
      _
    $region19: #{tpu_custom_call.1} parent=1 // pred_check_branch
      %22 = sbr.rel (0) target = $region21
    $region20: #{tpu_custom_call.1} parent=1 // pred_region
      _
    $region21: #{tpu_custom_call.1} parent=1 // pred_fallthru
      _
    // Predicated region
    $region22: #{tpu_custom_call.1} parent=1 // pred_check
      _
    $region23: #{tpu_custom_call.1} parent=1 // pred_check_branch
      %24 = sbr.rel (0) target = $region25
    $region24: #{tpu_custom_call.1} parent=1 // pred_region
      _
    $region25: #{tpu_custom_call.1} parent=1 // pred_fallthru
      _
    // Predicated region
    $region26: #{tpu_custom_call.1} parent=1 // pred_check
      _
    $region27: #{tpu_custom_call.1} parent=1 // pred_check_branch
      %26 = sbr.rel (0) target = $region29
    $region28: #{tpu_custom_call.1} parent=1 // pred_region
      _
    $region29: #{tpu_custom_call.1} parent=1 // pred_fallthru
      _
    %v27 = vld [vmem:[%s0] sm:$0xff]
    %v28 = vld [vmem:[%s0 + $0x8] sm:$0xff]
    %v29 = vld [vmem:[%s0 + $0x10] sm:$0xff]
    %v30 = vld [vmem:[%s0 + $0x18] sm:$0xff]
    %v31 = vld [vmem:[%s0 + $0x20] sm:$0xff]
    %v32 = vld [vmem:[%s0 + $0x28] sm:$0xff]
    %v33 = vld [vmem:[%s0 + $0x30] sm:$0xff]
    %v34 = vld [vmem:[%s0 + $0x38] sm:$0xff]
    %vm35 = vcmask 261120
    %v36 = vsel %vm35, %v27, 0.0
    %37 = vadd.xlane.f32.xlu0 %v36
    %v38 = vpop.xlane.xlu0 %37
    %v39 = vsel %vm35, %v28, 0.0
    %40 = vadd.xlane.f32.xlu0 %v39
    %v41 = vpop.xlane.xlu0 %40
    %v42 = vsel %vm35, %v29, 0.0
    %43 = vadd.xlane.f32.xlu0 %v42
    %v44 = vpop.xlane.xlu0 %43
    %v45 = vsel %vm35, %v30, 0.0
    %46 = vadd.xlane.f32.xlu0 %v45
    %v47 = vpop.xlane.xlu0 %46
    %v48 = vsel %vm35, %v31, 0.0
    %49 = vadd.xlane.f32.xlu0 %v48
    %v50 = vpop.xlane.xlu0 %49
    %v51 = vsel %vm35, %v32, 0.0
    %52 = vadd.xlane.f32.xlu0 %v51
    %v53 = vpop.xlane.xlu0 %52
    %v54 = vsel %vm35, %v33, 0.0
    %55 = vadd.xlane.f32.xlu0 %v54
    %v56 = vpop.xlane.xlu0 %55
    %v57 = vsel %vm35, %v34, 0.0
    %58 = vadd.xlane.f32.xlu0 %v57
    %v59 = vpop.xlane.xlu0 %58
    %v60 = vmul.f32 %v27, %v27
    %v61 = vmul.f32 %v28, %v28
    %v62 = vmul.f32 %v29, %v29
    %v63 = vmul.f32 %v30, %v30
    %v64 = vmul.f32 %v31, %v31
    %v65 = vmul.f32 %v32, %v32
    %v66 = vmul.f32 %v33, %v33
    %v67 = vmul.f32 %v34, %v34
    %v68 = vsel %vm35, %v60, 0.0
    %69 = vadd.xlane.f32.xlu0 %v68
    %v70 = vpop.xlane.xlu0 %69
    %v71 = vsel %vm35, %v61, 0.0
    %72 = vadd.xlane.f32.xlu0 %v71
    %v73 = vpop.xlane.xlu0 %72
    %v74 = vsel %vm35, %v62, 0.0
    %75 = vadd.xlane.f32.xlu0 %v74
    %v76 = vpop.xlane.xlu0 %75
    %v77 = vsel %vm35, %v63, 0.0
    %78 = vadd.xlane.f32.xlu0 %v77
    %v79 = vpop.xlane.xlu0 %78
    %v80 = vsel %vm35, %v64, 0.0
    %81 = vadd.xlane.f32.xlu0 %v80
    %v82 = vpop.xlane.xlu0 %81
    %v83 = vsel %vm35, %v65, 0.0
    %84 = vadd.xlane.f32.xlu0 %v83
    %v85 = vpop.xlane.xlu0 %84
    %v86 = vsel %vm35, %v66, 0.0
    %87 = vadd.xlane.f32.xlu0 %v86
    %v88 = vpop.xlane.xlu0 %87
    %v89 = vsel %vm35, %v67, 0.0
    %90 = vadd.xlane.f32.xlu0 %v89
    %v91 = vpop.xlane.xlu0 %90
    %v92 = vmul.f32 %v38, 0.03125
    %v93 = vmul.f32 %v41, 0.03125
    %v94 = vmul.f32 %v44, 0.03125
    %v95 = vmul.f32 %v47, 0.03125
    %v96 = vmul.f32 %v50, 0.03125
    %v97 = vmul.f32 %v53, 0.03125
    %v98 = vmul.f32 %v56, 0.03125
    %v99 = vmul.f32 %v59, 0.03125
    %v100 = vmul.f32 %v70, 0.03125
    %v101 = vmul.f32 %v73, 0.03125
    %v102 = vmul.f32 %v76, 0.03125
    %v103 = vmul.f32 %v79, 0.03125
    %v104 = vmul.f32 %v82, 0.03125
    %v105 = vmul.f32 %v85, 0.03125
    %v106 = vmul.f32 %v88, 0.03125
    %v107 = vmul.f32 %v91, 0.03125
    %v108 = vmul.f32 %v92, %v92
    %v109 = vmul.f32 %v93, %v93
    %v110 = vmul.f32 %v94, %v94
    %v111 = vmul.f32 %v95, %v95
    %v112 = vmul.f32 %v96, %v96
    %v113 = vmul.f32 %v97, %v97
    %v114 = vmul.f32 %v98, %v98
    %v115 = vmul.f32 %v99, %v99
    %v116 = vsub.f32 %v100, %v108
    %v117 = vsub.f32 %v101, %v109
    %v118 = vsub.f32 %v102, %v110
    %v119 = vsub.f32 %v103, %v111
    %v120 = vsub.f32 %v104, %v112
    %v121 = vsub.f32 %v105, %v113
    %v122 = vsub.f32 %v106, %v114
    %v123 = vsub.f32 %v107, %v115
    %v124 = vmax.f32 %v116, 0.0
    %v125 = vmax.f32 %v117, 0.0
    %v126 = vmax.f32 %v118, 0.0
    %v127 = vmax.f32 %v119, 0.0
    %v128 = vmax.f32 %v120, 0.0
    %v129 = vmax.f32 %v121, 0.0
    %v130 = vmax.f32 %v122, 0.0
    %v131 = vmax.f32 %v123, 0.0
    %v132 = vsub.f32 %v27, %v92
    %v133 = vsub.f32 %v28, %v93
    %v134 = vsub.f32 %v29, %v94
    %v135 = vsub.f32 %v30, %v95
    %v136 = vsub.f32 %v31, %v96
    %v137 = vsub.f32 %v32, %v97
    %v138 = vsub.f32 %v33, %v98
    %v139 = vsub.f32 %v34, %v99
    %v140 = vadd.f32 %v124, 1e-05
    %v141 = vadd.f32 %v125, 1e-05
    %v142 = vadd.f32 %v126, 1e-05
    %v143 = vadd.f32 %v127, 1e-05
    %v144 = vadd.f32 %v128, 1e-05
    %v145 = vadd.f32 %v129, 1e-05
    %v146 = vadd.f32 %v130, 1e-05
    %v147 = vadd.f32 %v131, 1e-05
    %v148 = vrsqrt.pop %v140
    %v149 = vrsqrt.pop %v141
    %v150 = vrsqrt.pop %v142
    %v151 = vrsqrt.pop %v143
    %v152 = vrsqrt.pop %v144
    %v153 = vrsqrt.pop %v145
    %v154 = vrsqrt.pop %v146
    %v155 = vrsqrt.pop %v147
    %v156 = vmul.f32 %v132, %v148
    %v157 = vmul.f32 %v133, %v149
    %v158 = vmul.f32 %v134, %v150
    %v159 = vmul.f32 %v135, %v151
    %v160 = vmul.f32 %v136, %v152
    %v161 = vmul.f32 %v137, %v153
    %v162 = vmul.f32 %v138, %v154
    %v163 = vmul.f32 %v139, %v155
    %v164 = vld [vmem:[%s1] sm:$0x1]
    %v166 = vlaneseq
    %v167 = vshrl.u32 %v166, 7
    %v168 = vsub.s32 0, %v167
    %v169 = vrot.slane %v164, %v168
    %v171 = vmul.f32 %v156, %v169
    %v172 = vmul.f32 %v157, %v169
    %v173 = vmul.f32 %v158, %v169
    %v174 = vmul.f32 %v159, %v169
    %v175 = vmul.f32 %v160, %v169
    %v176 = vmul.f32 %v161, %v169
    %v177 = vmul.f32 %v162, %v169
    %v178 = vmul.f32 %v163, %v169
    %v179 = vld [vmem:[%s2] sm:$0x1]
    %v181 = vlaneseq
    %v182 = vshrl.u32 %v181, 7
    %v183 = vsub.s32 0, %v182
    %v184 = vrot.slane %v179, %v183
    %v186 = vadd.f32 %v171, %v184
    %v187 = vadd.f32 %v172, %v184
    %v188 = vadd.f32 %v173, %v184
    %v189 = vadd.f32 %v174, %v184
    %v190 = vadd.f32 %v175, %v184
    %v191 = vadd.f32 %v176, %v184
    %v192 = vadd.f32 %v177, %v184
    %v193 = vadd.f32 %v178, %v184
    %v194 = vld [vmem:[%s3] sm:$0xff]
    %v195 = vld [vmem:[%s3 + $0x8] sm:$0xff]
    %v196 = vld [vmem:[%s3 + $0x10] sm:$0xff]
    %v197 = vld [vmem:[%s3 + $0x18] sm:$0xff]
    %v198 = vld [vmem:[%s4] sm:$0x1]
    %v200 = vlaneseq
    %v201 = vshrl.u32 %v200, 7
    %v202 = vsub.s32 0, %v201
    %v203 = vrot.slane %v198, %v202
    %v206 = vsel %vm35, %v186, 0
    %v209 = vsel %vm35, %v187, 0
    %v212 = vsel %vm35, %v188, 0
    %v215 = vsel %vm35, %v189, 0
    %v218 = vsel %vm35, %v190, 0
    %v221 = vsel %vm35, %v191, 0
    %v224 = vsel %vm35, %v192, 0
    %v227 = vsel %vm35, %v193, 0
    %229 = vmatprep.subr.mxu0 0.0
    %230 = vmatpush1.msra.mxu0 %v194
    %231 = vmatprep.subr.mxu0 0.0
    %232 = vmatpush1.msra.mxu0 %v195
    %233 = vmatprep.subr.mxu0 0.0
    %234 = vmatpush1.msra.mxu0 %v196
    %235 = vmatprep.subr.mxu0 0.0
    %236 = vmatpush1.msra.mxu0 %v197
    %237 = vmatprep.subr.mxu0 0.0
    %238 = vmatpush1.msra.mxu0 0.0
    %239 = vmatprep.subr.mxu0 0.0
    %240 = vmatpush1.msra.mxu0 0.0
    %241 = vmatprep.subr.mxu0 0.0
    %242 = vmatpush1.msra.mxu0 0.0
    %243 = vmatprep.subr.mxu0 0.0
    %244 = vmatpush1.msra.mxu0 0.0
    %245 = vmatprep.subr.mxu0 0.0
    %246 = vmatpush1.msra.mxu0 0.0
    %247 = vmatprep.subr.mxu0 0.0
    %248 = vmatpush1.msra.mxu0 0.0
    %249 = vmatprep.subr.mxu0 0.0
    %250 = vmatpush1.msra.mxu0 0.0
    %251 = vmatprep.subr.mxu0 0.0
    %252 = vmatpush1.msra.mxu0 0.0
    %253 = vmatprep.subr.mxu0 0.0
    %254 = vmatpush1.msra.mxu0 0.0
    %255 = vmatprep.subr.mxu0 0.0
    %256 = vmatpush1.msra.mxu0 0.0
    %257 = vmatprep.subr.mxu0 0.0
    %258 = vmatpush1.msra.mxu0 0.0
    %259 = vmatprep.subr.mxu0 0.0
    %260 = vmatpush1.msra.mxu0 0.0
    %261 = vmatprep.subr.mxu0 0.0
    %262 = vmatpush1.msra.mxu0 0.0
    %263 = vmatprep.subr.mxu0 0.0
    %264 = vmatpush1.msra.mxu0 0.0
    %265 = vmatprep.subr.mxu0 0.0
    %266 = vmatpush1.msra.mxu0 0.0
    %267 = vmatprep.subr.mxu0 0.0
    %268 = vmatpush1.msra.mxu0 0.0
    %269 = vmatprep.subr.mxu0 0.0
    %270 = vmatpush1.msra.mxu0 0.0
    %271 = vmatprep.subr.mxu0 0.0
    %272 = vmatpush1.msra.mxu0 0.0
    %273 = vmatprep.subr.mxu0 0.0
    %274 = vmatpush1.msra.mxu0 0.0
    %275 = vmatprep.subr.mxu0 0.0
    %276 = vmatpush1.msra.mxu0 0.0
    %277 = vmatprep.subr.mxu0 0.0
    %278 = vmatpush1.msra.mxu0 0.0
    %279 = vmatprep.subr.mxu0 0.0
    %280 = vmatpush1.msra.mxu0 0.0
    %281 = vmatprep.subr.mxu0 0.0
    %282 = vmatpush1.msra.mxu0 0.0
    %283 = vmatprep.subr.mxu0 0.0
    %284 = vmatpush1.msra.mxu0 0.0
    %285 = vmatprep.subr.mxu0 0.0
    %286 = vmatpush1.msra.mxu0 0.0
    %287 = vmatprep.subr.mxu0 0.0
    %288 = vmatpush1.msra.mxu0 0.0
    %289 = vmatprep.subr.mxu0 0.0
    %290 = vmatpush1.msra.mxu0 0.0
    %291 = vmatprep.subr.mxu0 0.0
    %292 = vmatpush1.msra.mxu0 0.0
    %293 = vmatprep.mubr.f32.mxu0 0.0
    %294 = vmatmul.mubr.f32.gmra.mrb[0].mxu0 %v206
    %v295 = vpop.f32.mrb[0].mxu0
    %v296 = vadd.f32 %v203, %v295
    %v297 = vpop.f32.mrb[0].mxu0
    %298 = vmatprep.mubr.f32.mxu0 0.0
    %299 = vmatmul.mubr.f32.gmra.mrb[0].mxu0 %v209
    %v300 = vpop.f32.mrb[0].mxu0
    %v301 = vadd.f32 %v203, %v300
    %v302 = vpop.f32.mrb[0].mxu0
    %303 = vmatprep.mubr.f32.mxu0 0.0
    %304 = vmatmul.mubr.f32.gmra.mrb[0].mxu0 %v212
    %v305 = vpop.f32.mrb[0].mxu0
    %v306 = vadd.f32 %v203, %v305
    %v307 = vpop.f32.mrb[0].mxu0
    %308 = vmatprep.mubr.f32.mxu0 0.0
    %309 = vmatmul.mubr.f32.gmra.mrb[0].mxu0 %v215
    %v310 = vpop.f32.mrb[0].mxu0
    %v311 = vadd.f32 %v203, %v310
    %v312 = vpop.f32.mrb[0].mxu0
    %313 = vmatprep.mubr.f32.mxu0 0.0
    %314 = vmatmul.mubr.f32.gmra.mrb[0].mxu0 %v218
    %v315 = vpop.f32.mrb[0].mxu0
    %v316 = vadd.f32 %v203, %v315
    %v317 = vpop.f32.mrb[0].mxu0
    %318 = vmatprep.mubr.f32.mxu0 0.0
    %319 = vmatmul.mubr.f32.gmra.mrb[0].mxu0 %v221
    %v320 = vpop.f32.mrb[0].mxu0
    %v321 = vadd.f32 %v203, %v320
    %v322 = vpop.f32.mrb[0].mxu0
    %323 = vmatprep.mubr.f32.mxu0 0.0
    %324 = vmatmul.mubr.f32.gmra.mrb[0].mxu0 %v224
    %v325 = vpop.f32.mrb[0].mxu0
    %v326 = vadd.f32 %v203, %v325
    %v327 = vpop.f32.mrb[0].mxu0
    %328 = vmatprep.mubr.f32.mxu0 0.0
    %329 = vmatmul.mubr.f32.gmra.mrb[0].mxu0 %v227
    %v330 = vpop.f32.mrb[0].mxu0
    %v331 = vadd.f32 %v203, %v330
    %v332 = vpop.f32.mrb[0].mxu0
    %333 = vdwg.mxu0
    %v334 = vld [vmem:[%s5] sm:$0xff]
    %v335 = vld [vmem:[%s5 + $0x8] sm:$0xff]
    %v336 = vld [vmem:[%s5 + $0x10] sm:$0xff]
    %v337 = vld [vmem:[%s5 + $0x18] sm:$0xff]
    %v338 = vld [vmem:[%s5 + $0x20] sm:$0xff]
    %v339 = vld [vmem:[%s5 + $0x28] sm:$0xff]
    %v340 = vld [vmem:[%s5 + $0x30] sm:$0xff]
    %v341 = vld [vmem:[%s5 + $0x38] sm:$0xff]
    %v342 = vsub.f32 %v296, %v334
    %v343 = vsub.f32 %v301, %v335
    %v344 = vsub.f32 %v306, %v336
    %v345 = vsub.f32 %v311, %v337
    %v346 = vsub.f32 %v316, %v338
    %v347 = vsub.f32 %v321, %v339
    %v348 = vsub.f32 %v326, %v340
    %v349 = vsub.f32 %v331, %v341
    %v350 = vmul.f32 %v342, %v342
    %v351 = vmul.f32 %v343, %v343
    %v352 = vmul.f32 %v344, %v344
    %v353 = vmul.f32 %v345, %v345
    %v354 = vmul.f32 %v346, %v346
    %v355 = vmul.f32 %v347, %v347
    %v356 = vmul.f32 %v348, %v348
    %v357 = vmul.f32 %v349, %v349
    %vm358 = vcmask 392192
    %v359 = vsel %vm358, %v350, 0.0
    %360 = vadd.xlane.f32.xlu0 %v359
    %v361 = vpop.xlane.xlu0 %360
    %v362 = vsel %vm358, %v351, 0.0
    %363 = vadd.xlane.f32.xlu0 %v362
    %v364 = vpop.xlane.xlu0 %363
    %v365 = vsel %vm358, %v352, 0.0
    %366 = vadd.xlane.f32.xlu0 %v365
    %v367 = vpop.xlane.xlu0 %366
    %v368 = vsel %vm358, %v353, 0.0
    %369 = vadd.xlane.f32.xlu0 %v368
    %v370 = vpop.xlane.xlu0 %369
    %v371 = vsel %vm358, %v354, 0.0
    %372 = vadd.xlane.f32.xlu0 %v371
    %v373 = vpop.xlane.xlu0 %372
    %v374 = vsel %vm358, %v355, 0.0
    %375 = vadd.xlane.f32.xlu0 %v374
    %v376 = vpop.xlane.xlu0 %375
    %v377 = vsel %vm358, %v356, 0.0
    %378 = vadd.xlane.f32.xlu0 %v377
    %v379 = vpop.xlane.xlu0 %378
    %v380 = vsel %vm358, %v357, 0.0
    %381 = vadd.xlane.f32.xlu0 %v380
    %v382 = vpop.xlane.xlu0 %381
    %v383 = vld [vmem:[%s6] sm:$0x1]
    %vm384 = vcmask 523264
    %v386 = vsel %vm384, %v383, 0
    %388 = vmatprep.subr.mxu0 0.0
    %389 = vmatpush1.msra.mxu0 %v361
    %390 = vmatprep.subr.mxu0 0.0
    %391 = vmatpush1.msra.mxu0 %v364
    %392 = vmatprep.subr.mxu0 0.0
    %393 = vmatpush1.msra.mxu0 %v367
    %394 = vmatprep.subr.mxu0 0.0
    %395 = vmatpush1.msra.mxu0 %v370
    %396 = vmatprep.subr.mxu0 0.0
    %397 = vmatpush1.msra.mxu0 %v373
    %398 = vmatprep.subr.mxu0 0.0
    %399 = vmatpush1.msra.mxu0 %v376
    %400 = vmatprep.subr.mxu0 0.0
    %401 = vmatpush1.msra.mxu0 %v379
    %402 = vmatprep.subr.mxu0 0.0
    %403 = vmatpush1.msra.mxu0 %v382
    %404 = vmatprep.subr.mxu0 0.0
    %405 = vmatpush1.msra.mxu0 0.0
    %406 = vmatprep.subr.mxu0 0.0
    %407 = vmatpush1.msra.mxu0 0.0
    %408 = vmatprep.subr.mxu0 0.0
    %409 = vmatpush1.msra.mxu0 0.0
    %410 = vmatprep.subr.mxu0 0.0
    %411 = vmatpush1.msra.mxu0 0.0
    %412 = vmatprep.subr.mxu0 0.0
    %413 = vmatpush1.msra.mxu0 0.0
    %414 = vmatprep.subr.mxu0 0.0
    %415 = vmatpush1.msra.mxu0 0.0
    %416 = vmatprep.subr.mxu0 0.0
    %417 = vmatpush1.msra.mxu0 0.0
    %418 = vmatprep.subr.mxu0 0.0
    %419 = vmatpush1.msra.mxu0 0.0
    %420 = vmatprep.subr.mxu0 0.0
    %421 = vmatpush1.msra.mxu0 0.0
    %422 = vmatprep.subr.mxu0 0.0
    %423 = vmatpush1.msra.mxu0 0.0
    %424 = vmatprep.subr.mxu0 0.0
    %425 = vmatpush1.msra.mxu0 0.0
    %426 = vmatprep.subr.mxu0 0.0
    %427 = vmatpush1.msra.mxu0 0.0
    %428 = vmatprep.subr.mxu0 0.0
    %429 = vmatpush1.msra.mxu0 0.0
    %430 = vmatprep.subr.mxu0 0.0
    %431 = vmatpush1.msra.mxu0 0.0
    %432 = vmatprep.subr.mxu0 0.0
    %433 = vmatpush1.msra.mxu0 0.0
    %434 = vmatprep.subr.mxu0 0.0
    %435 = vmatpush1.msra.mxu0 0.0
    %436 = vmatprep.subr.mxu0 0.0
    %437 = vmatpush1.msra.mxu0 0.0
    %438 = vmatprep.subr.mxu0 0.0
    %439 = vmatpush1.msra.mxu0 0.0
    %440 = vmatprep.subr.mxu0 0.0
    %441 = vmatpush1.msra.mxu0 0.0
    %442 = vmatprep.subr.mxu0 0.0
    %443 = vmatpush1.msra.mxu0 0.0
    %444 = vmatprep.subr.mxu0 0.0
    %445 = vmatpush1.msra.mxu0 0.0
    %446 = vmatprep.subr.mxu0 0.0
    %447 = vmatpush1.msra.mxu0 0.0
    %448 = vmatprep.subr.mxu0 0.0
    %449 = vmatpush1.msra.mxu0 0.0
    %450 = vmatprep.subr.mxu0 0.0
    %451 = vmatpush1.msra.mxu0 0.0
    %452 = vmatprep.mubr.f32.mxu0 0.0
    %453 = vmatmul.mubr.f32.gmra.mrb[0].mxu0 %v386
    %v454 = vpop.f32.mrb[0].mxu0
    %v455 = vadd.f32 0.0, %v454
    %v456 = vpop.f32.mrb[0].mxu0
    %457 = vdwg.mxu0
    %459 = vset.pattern.permute.xlu0 0
    %460 = vperm.xlu0 %459, %v455
    %v461 = vpop.permute.xlu0 %460
    %463 = vst [vmem:[#allocation2] sm:$0x1] %v461
    // Predicated region
    $region30: #{tpu_custom_call.1} parent=1 // pred_check
      _
    $region31: #{tpu_custom_call.1} parent=1 // pred_check_branch
      %465 = sbr.rel (0) target = $region33
    $region32: #{tpu_custom_call.1} parent=1 // pred_region
      %s467 = ssub.s32 16, 16
      %468 = vsyncadd [#allocation3], %s467
      %s470 = sshll.u32 [#allocation2], 4
      %s471 = int_to_ptr.vmem [resolvable:$true] %s470
      %473 = dma.vmem_to_hbm [thread:$0]  %s471, 16, %s7, [#allocation3]
    $region33: #{tpu_custom_call.1} parent=1 // pred_fallthru
      _
    // Predicated region
    $region34: #{tpu_custom_call.1} parent=1 // pred_check
      _
    $region35: #{tpu_custom_call.1} parent=1 // pred_check_branch
      %475 = sbr.rel (0) target = $region37
    $region36: #{tpu_custom_call.1} parent=1 // pred_region
      %476 = dma.done [#allocation3], 16
    $region37: #{tpu_custom_call.1} parent=1 // pred_fallthru
      _
    %477 = vsyncpa [#allocation3], 1

</llo_original>
